<compile_context>
chip_gen: v6e
topology: v6e:2x2x1
jax: 0.10.0
libtpu: 0.0.40
codegen_flags: <defaults>
</compile_context>

<pallas_src>
import jax
import jax.numpy as jnp
from jax import lax
from jax.experimental import pallas as pl
from jax.experimental.pallas import tpu as pltpu

_IN = 8            # net1 in_features
_HID = 16          # net1 out_features == net2 in_features
_OUT = 16          # net2/net3 out_features
_SMALL_BATCH_MAX = 1024   # gridless single-dispatch fast path up to here
_MAX_BATCH_TILE = 4096    # ~14 MiB VMEM worst case with lane-padded native blocks
_MIN_GRID_STEPS = 4       # v7x: give the "parallel" axis >= 4 steps for 2 TCs
_TILE_ALIGN = 512         # sublane-aligned, DMA-friendly batch tile granularity


def _mlp_kernel(x_ref, w1_ref, b1_ref, w2_ref, b2_ref, out_ref):
    """One batch tile in native (batch, features) orientation.

    x_ref:   (TB, 8)   activations (native torch layout)
    w1_ref:  (16, 8)   Linear(8, 16) weight, torch (out, in) layout
    b1_ref:  (1, 16)   bias, broadcast over batch rows
    w2_ref:  (16, 16)  shared Linear(16, 16) weight (net2 is net3)
    b2_ref:  (1, 16)
    out_ref: (TB, 16)  stored directly in the module's output layout
    """
    # Contract x's feature dim with each weight's in-features dim: x @ W^T,
    # no transposes materialized anywhere.
    dn = (((1,), (1,)), ((), ()))

    x = x_ref[...]
    w2 = w2_ref[...]
    b2 = b2_ref[...]

    # net1: Linear(8 -> 16) + ReLU
    h = lax.dot_general(x, w1_ref[...], dn, preferred_element_type=jnp.float32)
    h = jnp.maximum(h + b1_ref[...], 0.0)

    # net2 / net3 share weights: Linear(16 -> 16) + ReLU, applied twice.
    h = jnp.maximum(
        lax.dot_general(h, w2, dn, preferred_element_type=jnp.float32) + b2, 0.0)
    h = jnp.maximum(
        lax.dot_general(h, w2, dn, preferred_element_type=jnp.float32) + b2, 0.0)

    out_ref[...] = h.astype(out_ref.dtype)


def _round_up(n, m):
    return ((n + m - 1) // m) * m


@jax.jit
def dummy_model_forward(x, w1, b1, w2, b2):
    """x: (B, 8) fp32. Weights/biases in native torch nn.Linear layout:
    w1 (16, 8), b1 (16,), w2 (16, 16), b2 (16,). Returns (B, 16) fp32."""
    B = x.shape[0]
    b1r = b1.reshape(1, _HID)   # metadata-only reshapes, fused under jit
    b2r = b2.reshape(1, _OUT)

    if B <= _SMALL_BATCH_MAX:
        # Fast path (the benchmark shape B=8 lands here): single dispatch,
        # full-array VMEM blocks, no grid / pipeline / padding machinery.
        return pl.pallas_call(
            _mlp_kernel,
            out_shape=jax.ShapeDtypeStruct((B, _OUT), jnp.float32),
        )(x, w1, b1r, w2, b2r)

    # Tiled path: batch tile chosen so the 1-D "parallel" grid has at least
    # _MIN_GRID_STEPS steps (v7x 2-TC split), capped by the VMEM budget.
    tb = min(_MAX_BATCH_TILE, _round_up(pl.cdiv(B, _MIN_GRID_STEPS), _TILE_ALIGN))
    grid = (pl.cdiv(B, tb),)          # ragged last block: Pallas masks the writeback
    const = lambda i: (0, 0)          # weights/biases stay VMEM-resident

    return pl.pallas_call(
        _mlp_kernel,
        out_shape=jax.ShapeDtypeStruct((B, _OUT), jnp.float32),
        grid=grid,
        in_specs=[
            pl.BlockSpec((tb, _IN), lambda i: (i, 0)),   # x: pipelined over batch
            pl.BlockSpec((_HID, _IN), const),            # w1
            pl.BlockSpec((1, _HID), const),              # b1
            pl.BlockSpec((_OUT, _HID), const),           # w2 (shared by net2/net3)
            pl.BlockSpec((1, _OUT), const),              # b2
        ],
        out_specs=pl.BlockSpec((tb, _OUT), lambda i: (i, 0)),
        compiler_params=pltpu.CompilerParams(
            dimension_semantics=("parallel",),           # v7x: split batch over 2 TCs
            vmem_limit_bytes=32 * 1024 * 1024,           # safe on v5e/v6e/v7x
        ),
    )(x, w1, b1r, w2, b2r)


def init_params(key):
    """Deterministic params in torch nn.Linear layout: weight (out, in), bias (out,)."""
    k1, k2, k3, k4, k5 = jax.random.split(key, 5)

    def uniform(k, shape, fan_in):
        bound = 1.0 / jnp.sqrt(fan_in)
        return jax.random.uniform(k, shape, jnp.float32, -bound, bound)

    w1 = uniform(k1, (_HID, _IN), float(_IN))      # net1: Linear(8, 16)
    b1 = uniform(k2, (_HID,), float(_IN))
    w2 = uniform(k3, (_OUT, _HID), float(_HID))    # net2 == net3 (shared weights)
    b2 = uniform(k4, (_OUT,), float(_HID))
    # random_parameter / shared_parameter (10,) are unused in forward();
    # created only for parameter-set parity with the module.
    random_parameter = uniform(k5, (10,), 10.0)
    return w1, b1, w2, b2, random_parameter


def reference_forward(x, w1, b1, w2, b2):
    p = lax.Precision.HIGHEST
    h = jax.nn.relu(jnp.dot(x, w1.T, precision=p) + b1)
    h = jax.nn.relu(jnp.dot(h, w2.T, precision=p) + b2)
    h = jax.nn.relu(jnp.dot(h, w2.T, precision=p) + b2)
    return h


if __name__ == "__main__":
    key = jax.random.PRNGKey(0)
    pkey, xkey, xlkey = jax.random.split(key, 3)
    w1, b1, w2, b2, _unused = init_params(pkey)

    # get_input(): torch.rand(8, 8) -> batch=8, features=8 (small-batch fast path).
    x = jax.random.uniform(xkey, (8, 8), jnp.float32)
    out = jax.block_until_ready(dummy_model_forward(x, w1, b1, w2, b2))
    ref = reference_forward(x, w1, b1, w2, b2)
    assert out.shape == (8, 16), out.shape
    assert jnp.allclose(out, ref, atol=2e-3, rtol=2e-3), (
        f"small-batch mismatch: max|diff|={jnp.max(jnp.abs(out - ref))}"
    )

    # Also exercise the tiled large-batch path, including a ragged last block
    # (B=2000 -> tb=512, grid=4, last block partially masked on writeback).
    xl = jax.random.uniform(xlkey, (2000, 8), jnp.float32)
    outl = jax.block_until_ready(dummy_model_forward(xl, w1, b1, w2, b2))
    refl = reference_forward(xl, w1, b1, w2, b2)
    assert outl.shape == (2000, 16), outl.shape
    assert jnp.allclose(outl, refl, atol=2e-3, rtol=2e-3), (
        f"tiled-path mismatch: max|diff|={jnp.max(jnp.abs(outl - refl))}"
    )

    print("KERNEL_OK")
</pallas_src>

<mosaic_0001>
module attributes {stable_mosaic.version = 11 : i64} {
  func.func @_mlp_kernel(%arg0: memref<8x8xf32, #tpu.memory_space<vmem>>, %arg1: memref<16x8xf32, #tpu.memory_space<vmem>>, %arg2: memref<1x16xf32, #tpu.memory_space<vmem>>, %arg3: memref<16x16xf32, #tpu.memory_space<vmem>>, %arg4: memref<1x16xf32, #tpu.memory_space<vmem>>, %arg5: memref<8x16xf32, #tpu.memory_space<vmem>>) attributes {dimension_semantics = [], scalar_prefetch = 0 : i64, scratch_operands = 0 : i64, tpu.core_type = #tpu.core_type<tc>} {
    %c0 = arith.constant 0 : index
    %c0_0 = arith.constant 0 : index
    %0 = vector.load %arg0[%c0, %c0_0] : memref<8x8xf32, #tpu.memory_space<vmem>>, vector<8x8xf32>
    %c0_1 = arith.constant 0 : index
    %c0_2 = arith.constant 0 : index
    %1 = vector.load %arg3[%c0_1, %c0_2] : memref<16x16xf32, #tpu.memory_space<vmem>>, vector<16x16xf32>
    %c0_3 = arith.constant 0 : index
    %c0_4 = arith.constant 0 : index
    %2 = vector.load %arg4[%c0_3, %c0_4] : memref<1x16xf32, #tpu.memory_space<vmem>>, vector<1x16xf32>
    %c0_5 = arith.constant 0 : index
    %c0_6 = arith.constant 0 : index
    %3 = vector.load %arg1[%c0_5, %c0_6] : memref<16x8xf32, #tpu.memory_space<vmem>>, vector<16x8xf32>
    %cst = arith.constant dense<0.000000e+00> : vector<8x16xf32>
    %4 = tpu.matmul %0, %3, %cst {dimension_numbers = #tpu.dot_dimension_numbers<[1], [1], [0], [0], [0, 0, 1, 0], [], []>} : vector<8x8xf32>, vector<16x8xf32>, vector<8x16xf32> -> vector<8x16xf32>
    %c0_7 = arith.constant 0 : index
    %c0_8 = arith.constant 0 : index
    %5 = vector.load %arg2[%c0_7, %c0_8] : memref<1x16xf32, #tpu.memory_space<vmem>>, vector<1x16xf32>
    %6 = vector.broadcast %5 : vector<1x16xf32> to vector<8x16xf32>
    %7 = arith.addf %4, %6 : vector<8x16xf32>
    %cst_9 = arith.constant 0.000000e+00 : f32
    %8 = vector.broadcast %cst_9 : f32 to vector<8x16xf32>
    %9 = arith.maximumf %7, %8 : vector<8x16xf32>
    %cst_10 = arith.constant dense<0.000000e+00> : vector<8x16xf32>
    %10 = tpu.matmul %9, %1, %cst_10 {dimension_numbers = #tpu.dot_dimension_numbers<[1], [1], [0], [0], [0, 0, 1, 0], [], []>} : vector<8x16xf32>, vector<16x16xf32>, vector<8x16xf32> -> vector<8x16xf32>
    %11 = vector.broadcast %2 : vector<1x16xf32> to vector<8x16xf32>
    %12 = arith.addf %10, %11 : vector<8x16xf32>
    %cst_11 = arith.constant 0.000000e+00 : f32
    %13 = vector.broadcast %cst_11 : f32 to vector<8x16xf32>
    %14 = arith.maximumf %12, %13 : vector<8x16xf32>
    %cst_12 = arith.constant dense<0.000000e+00> : vector<8x16xf32>
    %15 = tpu.matmul %14, %1, %cst_12 {dimension_numbers = #tpu.dot_dimension_numbers<[1], [1], [0], [0], [0, 0, 1, 0], [], []>} : vector<8x16xf32>, vector<16x16xf32>, vector<8x16xf32> -> vector<8x16xf32>
    %16 = vector.broadcast %2 : vector<1x16xf32> to vector<8x16xf32>
    %17 = arith.addf %15, %16 : vector<8x16xf32>
    %cst_13 = arith.constant 0.000000e+00 : f32
    %18 = vector.broadcast %cst_13 : f32 to vector<8x16xf32>
    %19 = arith.maximumf %17, %18 : vector<8x16xf32>
    %c0_14 = arith.constant 0 : index
    %c0_15 = arith.constant 0 : index
    %20 = vector.load %arg5[%c0_14, %c0_15] : memref<8x16xf32, #tpu.memory_space<vmem>>, vector<8x16xf32>
    tpu.vector_store %arg5[%c0_14, %c0_15], %19 {strides = array<i32>} : memref<8x16xf32, #tpu.memory_space<vmem>>, vector<8x16xf32>,
    return
  }
}

</mosaic_0001>

<llo_original>
// kernel: dummy_model_forward.1
$region0: #{dummy_model_forward.1}
  #allocation0 [shape = 'u32[]', space=smem, size = 0x4, offset = 0x4, fixed_abs, tag = 'smem constant byte address 0x4 - core index']
  #allocation1 [shape = 'u32[144,128]{1,0:T(1,128)}', space=vmem, size = 0x12000, scoped, tag = 'internal scratch']
  %s0 = inlined_call_operand.vmem [shape: f32[8,8], index: 0, kind: input, shape index: {}]
  %s1 = inlined_call_operand.vmem [shape: f32[16,8], index: 1, kind: input, shape index: {}]
  %s2 = inlined_call_operand.vmem [shape: f32[1,16], index: 2, kind: input, shape index: {}]
  %s3 = inlined_call_operand.vmem [shape: f32[16,16], index: 3, kind: input, shape index: {}]
  %s4 = inlined_call_operand.vmem [shape: f32[1,16], index: 4, kind: input, shape index: {}]
  %s5 = inlined_call_operand.hbm [shape: f32[8,16], index: 5, kind: output, shape index: {}]
  %s6 = sld [smem:[#allocation0]]
  $region30: #{dummy_model_forward.1} parent=0
    _
  %s8 = ssub.s32 1, %s6
  %s9 = scalar_select 0, %s8, %s6
  $region1: #{dummy_model_forward.1} parent=0
    #allocation2 [shape = 'u8[4096]{0}', space=vmem, size = 0x1000, scoped, tag = 'output window, operand 0, single buffered']
    #allocation3 [shape = 's32[1]{0}', space=sflag, size = 0x4, scoped, tag = 'scoped memory for dummy_model_forward.1']
    %10 = vsyncpa [#allocation3], 0
    // Predicated region
    $region2: #{dummy_model_forward.1} parent=1 // pred_check
      _
    $region3: #{dummy_model_forward.1} parent=1 // pred_check_branch
      %12 = sbr.rel (0) target = $region5
    $region4: #{dummy_model_forward.1} parent=1 // pred_region
      _
    $region5: #{dummy_model_forward.1} parent=1 // pred_fallthru
      _
    // Predicated region
    $region6: #{dummy_model_forward.1} parent=1 // pred_check
      _
    $region7: #{dummy_model_forward.1} parent=1 // pred_check_branch
      %14 = sbr.rel (0) target = $region9
    $region8: #{dummy_model_forward.1} parent=1 // pred_region
      _
    $region9: #{dummy_model_forward.1} parent=1 // pred_fallthru
      _
    // Predicated region
    $region10: #{dummy_model_forward.1} parent=1 // pred_check
      _
    $region11: #{dummy_model_forward.1} parent=1 // pred_check_branch
      %16 = sbr.rel (0) target = $region13
    $region12: #{dummy_model_forward.1} parent=1 // pred_region
      _
    $region13: #{dummy_model_forward.1} parent=1 // pred_fallthru
      _
    // Predicated region
    $region14: #{dummy_model_forward.1} parent=1 // pred_check
      _
    $region15: #{dummy_model_forward.1} parent=1 // pred_check_branch
      %18 = sbr.rel (0) target = $region17
    $region16: #{dummy_model_forward.1} parent=1 // pred_region
      _
    $region17: #{dummy_model_forward.1} parent=1 // pred_fallthru
      _
    // Predicated region
    $region18: #{dummy_model_forward.1} parent=1 // pred_check
      _
    $region19: #{dummy_model_forward.1} parent=1 // pred_check_branch
      %20 = sbr.rel (0) target = $region21
    $region20: #{dummy_model_forward.1} parent=1 // pred_region
      _
    $region21: #{dummy_model_forward.1} parent=1 // pred_fallthru
      _
    %v21 = vld [vmem:[%s0] sm:$0xff]
    %v22 = vld [vmem:[%s3] sm:$0xff]
    %v23 = vld [vmem:[%s3 + $0x8] sm:$0xff]
    %v24 = vld [vmem:[%s4] sm:$0x1]
    %v25 = vld [vmem:[%s1] sm:$0xff]
    %v26 = vld [vmem:[%s1 + $0x8] sm:$0xff]
    %v27 = vld [vmem:[%s2] sm:$0x1]
    %v29 = vlaneseq
    %v30 = vshrl.u32 %v29, 7
    %v31 = vsub.s32 0, %v30
    %v32 = vrot.slane %v27, %v31
    %vm34 = vcmask 64512
    %v36 = vsel %vm34, %v21, 0
    %v39 = vsel %vm34, %v25, 0
    %v42 = vsel %vm34, %v26, 0
    %44 = vmatprep.subr.mxu0 0.0
    %45 = vmatpush1.xpose.msra.mxu0 0.0
    %46 = vmatprep.subr.mxu0 0.0
    %47 = vmatpush1.xpose.msra.mxu0 0.0
    %48 = vmatprep.subr.mxu0 0.0
    %49 = vmatpush1.xpose.msra.mxu0 0.0
    %50 = vmatprep.subr.mxu0 0.0
    %51 = vmatpush1.xpose.msra.mxu0 0.0
    %52 = vmatprep.subr.mxu0 0.0
    %53 = vmatpush1.xpose.msra.mxu0 0.0
    %54 = vmatprep.subr.mxu0 0.0
    %55 = vmatpush1.xpose.msra.mxu0 0.0
    %56 = vmatprep.subr.mxu0 0.0
    %57 = vmatpush1.xpose.msra.mxu0 0.0
    %58 = vmatprep.subr.mxu0 0.0
    %59 = vmatpush1.xpose.msra.mxu0 0.0
    %60 = vmatprep.subr.mxu0 0.0
    %61 = vmatpush1.xpose.msra.mxu0 0.0
    %62 = vmatprep.subr.mxu0 0.0
    %63 = vmatpush1.xpose.msra.mxu0 0.0
    %64 = vmatprep.subr.mxu0 0.0
    %65 = vmatpush1.xpose.msra.mxu0 0.0
    %66 = vmatprep.subr.mxu0 0.0
    %67 = vmatpush1.xpose.msra.mxu0 0.0
    %68 = vmatprep.subr.mxu0 0.0
    %69 = vmatpush1.xpose.msra.mxu0 0.0
    %70 = vmatprep.subr.mxu0 0.0
    %71 = vmatpush1.xpose.msra.mxu0 0.0
    %72 = vmatprep.subr.mxu0 0.0
    %73 = vmatpush1.xpose.msra.mxu0 %v42
    %74 = vmatprep.subr.mxu0 0.0
    %75 = vmatpush1.xpose.msra.mxu0 %v39
    %76 = vmatprep.subr.mxu0 0.0
    %77 = vmatpush2.xpose.msra.mxu0 0.0
    %78 = vmatprep.subr.mxu0 0.0
    %79 = vmatpush2.xpose.msra.mxu0 0.0
    %80 = vmatprep.subr.mxu0 0.0
    %81 = vmatpush2.xpose.msra.mxu0 0.0
    %82 = vmatprep.subr.mxu0 0.0
    %83 = vmatpush2.xpose.msra.mxu0 0.0
    %84 = vmatprep.subr.mxu0 0.0
    %85 = vmatpush2.xpose.msra.mxu0 0.0
    %86 = vmatprep.subr.mxu0 0.0
    %87 = vmatpush2.xpose.msra.mxu0 0.0
    %88 = vmatprep.subr.mxu0 0.0
    %89 = vmatpush2.xpose.msra.mxu0 0.0
    %90 = vmatprep.subr.mxu0 0.0
    %91 = vmatpush2.xpose.msra.mxu0 0.0
    %92 = vmatprep.subr.mxu0 0.0
    %93 = vmatpush2.xpose.msra.mxu0 0.0
    %94 = vmatprep.subr.mxu0 0.0
    %95 = vmatpush2.xpose.msra.mxu0 0.0
    %96 = vmatprep.subr.mxu0 0.0
    %97 = vmatpush2.xpose.msra.mxu0 0.0
    %98 = vmatprep.subr.mxu0 0.0
    %99 = vmatpush2.xpose.msra.mxu0 0.0
    %100 = vmatprep.subr.mxu0 0.0
    %101 = vmatpush2.xpose.msra.mxu0 0.0
    %102 = vmatprep.subr.mxu0 0.0
    %103 = vmatpush2.xpose.msra.mxu0 0.0
    %104 = vmatprep.subr.mxu0 0.0
    %105 = vmatpush2.xpose.msra.mxu0 0.0
    %106 = vmatprep.subr.mxu0 0.0
    %107 = vmatpush2.xpose.msra.mxu0 0.0
    %108 = vmatprep.mubr.f32.mxu0 0.0
    %109 = vmatmul.mubr.f32.gmra.mxu0 %v36
    %v110 = vpop.f32.mrf.mxu0
    %v111 = vadd.f32 %v32, %v110
    %v112 = vpop.f32.mrf.mxu0
    %113 = vdwg.mxu0
    %v114 = vmax.f32 %v111, 0.0
    %v116 = vlaneseq
    %v117 = vshrl.u32 %v116, 7
    %v118 = vsub.s32 0, %v117
    %v119 = vrot.slane %v24, %v118
    %vm121 = vcmask 130048
    %v123 = vsel %vm121, %v114, 0
    %v126 = vsel %vm121, %v22, 0
    %v129 = vsel %vm121, %v23, 0
    %131 = vmatprep.subr.mxu0 0.0
    %132 = vmatpush1.xpose.msra.mxu0 0.0
    %133 = vmatprep.subr.mxu0 0.0
    %134 = vmatpush1.xpose.msra.mxu0 0.0
    %135 = vmatprep.subr.mxu0 0.0
    %136 = vmatpush1.xpose.msra.mxu0 0.0
    %137 = vmatprep.subr.mxu0 0.0
    %138 = vmatpush1.xpose.msra.mxu0 0.0
    %139 = vmatprep.subr.mxu0 0.0
    %140 = vmatpush1.xpose.msra.mxu0 0.0
    %141 = vmatprep.subr.mxu0 0.0
    %142 = vmatpush1.xpose.msra.mxu0 0.0
    %143 = vmatprep.subr.mxu0 0.0
    %144 = vmatpush1.xpose.msra.mxu0 0.0
    %145 = vmatprep.subr.mxu0 0.0
    %146 = vmatpush1.xpose.msra.mxu0 0.0
    %147 = vmatprep.subr.mxu0 0.0
    %148 = vmatpush1.xpose.msra.mxu0 0.0
    %149 = vmatprep.subr.mxu0 0.0
    %150 = vmatpush1.xpose.msra.mxu0 0.0
    %151 = vmatprep.subr.mxu0 0.0
    %152 = vmatpush1.xpose.msra.mxu0 0.0
    %153 = vmatprep.subr.mxu0 0.0
    %154 = vmatpush1.xpose.msra.mxu0 0.0
    %155 = vmatprep.subr.mxu0 0.0
    %156 = vmatpush1.xpose.msra.mxu0 0.0
    %157 = vmatprep.subr.mxu0 0.0
    %158 = vmatpush1.xpose.msra.mxu0 0.0
    %159 = vmatprep.subr.mxu0 0.0
    %160 = vmatpush1.xpose.msra.mxu0 %v129
    %161 = vmatprep.subr.mxu0 0.0
    %162 = vmatpush1.xpose.msra.mxu0 %v126
    %163 = vmatprep.subr.mxu0 0.0
    %164 = vmatpush2.xpose.msra.mxu0 0.0
    %165 = vmatprep.subr.mxu0 0.0
    %166 = vmatpush2.xpose.msra.mxu0 0.0
    %167 = vmatprep.subr.mxu0 0.0
    %168 = vmatpush2.xpose.msra.mxu0 0.0
    %169 = vmatprep.subr.mxu0 0.0
    %170 = vmatpush2.xpose.msra.mxu0 0.0
    %171 = vmatprep.subr.mxu0 0.0
    %172 = vmatpush2.xpose.msra.mxu0 0.0
    %173 = vmatprep.subr.mxu0 0.0
    %174 = vmatpush2.xpose.msra.mxu0 0.0
    %175 = vmatprep.subr.mxu0 0.0
    %176 = vmatpush2.xpose.msra.mxu0 0.0
    %177 = vmatprep.subr.mxu0 0.0
    %178 = vmatpush2.xpose.msra.mxu0 0.0
    %179 = vmatprep.subr.mxu0 0.0
    %180 = vmatpush2.xpose.msra.mxu0 0.0
    %181 = vmatprep.subr.mxu0 0.0
    %182 = vmatpush2.xpose.msra.mxu0 0.0
    %183 = vmatprep.subr.mxu0 0.0
    %184 = vmatpush2.xpose.msra.mxu0 0.0
    %185 = vmatprep.subr.mxu0 0.0
    %186 = vmatpush2.xpose.msra.mxu0 0.0
    %187 = vmatprep.subr.mxu0 0.0
    %188 = vmatpush2.xpose.msra.mxu0 0.0
    %189 = vmatprep.subr.mxu0 0.0
    %190 = vmatpush2.xpose.msra.mxu0 0.0
    %191 = vmatprep.subr.mxu0 0.0
    %192 = vmatpush2.xpose.msra.mxu0 0.0
    %193 = vmatprep.subr.mxu0 0.0
    %194 = vmatpush2.xpose.msra.mxu0 0.0
    %195 = vmatprep.mubr.f32.mxu0 0.0
    %196 = vmatmul.mubr.f32.gmra.mxu0 %v123
    %v197 = vpop.f32.mrf.mxu0
    %v198 = vadd.f32 %v119, %v197
    %v199 = vpop.f32.mrf.mxu0
    %200 = vdwg.mxu0
    %v201 = vmax.f32 %v198, 0.0
    %v203 = vsel %vm121, %v201, 0
    %205 = vmatprep.subr.mxu0 0.0
    %206 = vmatpush1.xpose.msra.mxu0 0.0
    %207 = vmatprep.subr.mxu0 0.0
    %208 = vmatpush1.xpose.msra.mxu0 0.0
    %209 = vmatprep.subr.mxu0 0.0
    %210 = vmatpush1.xpose.msra.mxu0 0.0
    %211 = vmatprep.subr.mxu0 0.0
    %212 = vmatpush1.xpose.msra.mxu0 0.0
    %213 = vmatprep.subr.mxu0 0.0
    %214 = vmatpush1.xpose.msra.mxu0 0.0
    %215 = vmatprep.subr.mxu0 0.0
    %216 = vmatpush1.xpose.msra.mxu0 0.0
    %217 = vmatprep.subr.mxu0 0.0
    %218 = vmatpush1.xpose.msra.mxu0 0.0
    %219 = vmatprep.subr.mxu0 0.0
    %220 = vmatpush1.xpose.msra.mxu0 0.0
    %221 = vmatprep.subr.mxu0 0.0
    %222 = vmatpush1.xpose.msra.mxu0 0.0
    %223 = vmatprep.subr.mxu0 0.0
    %224 = vmatpush1.xpose.msra.mxu0 0.0
    %225 = vmatprep.subr.mxu0 0.0
    %226 = vmatpush1.xpose.msra.mxu0 0.0
    %227 = vmatprep.subr.mxu0 0.0
    %228 = vmatpush1.xpose.msra.mxu0 0.0
    %229 = vmatprep.subr.mxu0 0.0
    %230 = vmatpush1.xpose.msra.mxu0 0.0
    %231 = vmatprep.subr.mxu0 0.0
    %232 = vmatpush1.xpose.msra.mxu0 0.0
    %233 = vmatprep.subr.mxu0 0.0
    %234 = vmatpush1.xpose.msra.mxu0 %v129
    %235 = vmatprep.subr.mxu0 0.0
    %236 = vmatpush1.xpose.msra.mxu0 %v126
    %237 = vmatprep.subr.mxu0 0.0
    %238 = vmatpush2.xpose.msra.mxu0 0.0
    %239 = vmatprep.subr.mxu0 0.0
    %240 = vmatpush2.xpose.msra.mxu0 0.0
    %241 = vmatprep.subr.mxu0 0.0
    %242 = vmatpush2.xpose.msra.mxu0 0.0
    %243 = vmatprep.subr.mxu0 0.0
    %244 = vmatpush2.xpose.msra.mxu0 0.0
    %245 = vmatprep.subr.mxu0 0.0
    %246 = vmatpush2.xpose.msra.mxu0 0.0
    %247 = vmatprep.subr.mxu0 0.0
    %248 = vmatpush2.xpose.msra.mxu0 0.0
    %249 = vmatprep.subr.mxu0 0.0
    %250 = vmatpush2.xpose.msra.mxu0 0.0
    %251 = vmatprep.subr.mxu0 0.0
    %252 = vmatpush2.xpose.msra.mxu0 0.0
    %253 = vmatprep.subr.mxu0 0.0
    %254 = vmatpush2.xpose.msra.mxu0 0.0
    %255 = vmatprep.subr.mxu0 0.0
    %256 = vmatpush2.xpose.msra.mxu0 0.0
    %257 = vmatprep.subr.mxu0 0.0
    %258 = vmatpush2.xpose.msra.mxu0 0.0
    %259 = vmatprep.subr.mxu0 0.0
    %260 = vmatpush2.xpose.msra.mxu0 0.0
    %261 = vmatprep.subr.mxu0 0.0
    %262 = vmatpush2.xpose.msra.mxu0 0.0
    %263 = vmatprep.subr.mxu0 0.0
    %264 = vmatpush2.xpose.msra.mxu0 0.0
    %265 = vmatprep.subr.mxu0 0.0
    %266 = vmatpush2.xpose.msra.mxu0 0.0
    %267 = vmatprep.subr.mxu0 0.0
    %268 = vmatpush2.xpose.msra.mxu0 0.0
    %269 = vmatprep.mubr.f32.mxu0 0.0
    %270 = vmatmul.mubr.f32.gmra.mxu0 %v203
    %v271 = vpop.f32.mrf.mxu0
    %v272 = vadd.f32 %v119, %v271
    %v273 = vpop.f32.mrf.mxu0
    %274 = vdwg.mxu0
    %v275 = vmax.f32 %v272, 0.0
    %276 = vst.msk [vmem:[#allocation2] sm:$0xff] %vm121, %v275
    // Predicated region
    $region22: #{dummy_model_forward.1} parent=1 // pred_check
      _
    $region23: #{dummy_model_forward.1} parent=1 // pred_check_branch
      %278 = sbr.rel (0) target = $region25
    $region24: #{dummy_model_forward.1} parent=1 // pred_region
      %s280 = ssub.s32 128, 128
      %281 = vsyncadd [#allocation3], %s280
      %s283 = sshll.u32 [#allocation2], 4
      %s284 = int_to_ptr.vmem [resolvable:$true] %s283
      %286 = dma.vmem_to_hbm [thread:$0]  %s284, 128, %s5, [#allocation3]
    $region25: #{dummy_model_forward.1} parent=1 // pred_fallthru
      _
    // Predicated region
    $region26: #{dummy_model_forward.1} parent=1 // pred_check
      _
    $region27: #{dummy_model_forward.1} parent=1 // pred_check_branch
      %288 = sbr.rel (0) target = $region29
    $region28: #{dummy_model_forward.1} parent=1 // pred_region
      %289 = dma.done [#allocation3], 128
    $region29: #{dummy_model_forward.1} parent=1 // pred_fallthru
      _
    %290 = vsyncpa [#allocation3], 1

</llo_original>
